<compile_context>
chip_gen: v6e
topology: v6e:2x2x1
jax: 0.10.0
libtpu: 0.0.40
codegen_flags: <defaults>
</compile_context>

<pallas_src>
import math

import jax
import jax.numpy as jnp
from jax import lax
from jax.experimental import pallas as pl
from jax.experimental.pallas import tpu as pltpu


def linguo_kernel(ids_ref, emb_ref, wpack_ref, fp_ref, out_ref):
    """Fused embedding gather + LSTM recurrence + 2-class decoder + log_softmax.

    ids_ref:   [T]       int32 (SMEM)
    emb_ref:   [V, 1, E] bf16  (VMEM)  embedding table, leading dim = vocab
    wpack_ref: [E+H, 4H] bf16  (VMEM)  rows [0:E) = W_ih, rows [E:E+H) = W_hh
    fp_ref:    [3, 4H]   f32   (VMEM)  row0 = b_ih+b_hh, row1[:H] = w_dec[1]-w_dec[0],
                                       row2[0] = b_dec[1]-b_dec[0]
    out_ref:   [1, 2]    f32   (VMEM)  log-probs, classes along lanes
    Gate order is PyTorch's (i, f, g, o).
    """
    T = ids_ref.shape[0]
    V = emb_ref.shape[0]
    E = emb_ref.shape[2]
    H4 = wpack_ref.shape[1]
    H = H4 // 4

    # ---- Embedding gather: SMEM scalar ids index the leading (vocab) dim. ----
    # (clip keeps out-of-range ids from reading OOB VMEM; nn.Embedding would raise)
    rows = [emb_ref[jnp.clip(ids_ref[t], 0, V - 1)].astype(jnp.float32)
            for t in range(T)]                                   # T x [1, E]
    embeds = jnp.concatenate(rows, axis=0)                       # [T, E] f32

    # ---- Pre-packed, pre-cast weights (static slices; no per-call casts). ----
    w_ih = wpack_ref[0:E, :]                                     # [E, 4H] bf16
    w_hh = wpack_ref[E:E + H, :]                                 # [H, 4H] bf16
    b = fp_ref[0:1, :]                                           # [1, 4H] f32

    # ---- Input projection + bias hoisted out of the recurrence (one MXU pass). ----
    xg = jnp.dot(embeds.astype(jnp.bfloat16), w_ih,
                 preferred_element_type=jnp.float32) + b         # [T, 4H] f32

    # ---- Single-tanh gate trick: sigmoid(x) = 0.5*tanh(0.5*x) + 0.5. ----
    lane = lax.broadcasted_iota(jnp.int32, (1, H4), 1)
    is_g = (lane >= 2 * H) & (lane < 3 * H)
    mult = jnp.where(is_g, 1.0, 0.5).astype(jnp.float32)         # hoisted [1, 4H]

    # ---- Fully unrolled recurrence (T static & small; carry is 2 x [1, H] f32). ----
    h = jnp.zeros((1, H), jnp.float32)
    c = jnp.zeros((1, H), jnp.float32)
    for t in range(T):
        gates = xg[t:t + 1, :] + jnp.dot(h.astype(jnp.bfloat16), w_hh,
                                         preferred_element_type=jnp.float32)  # [1,4H]
        t_all = jnp.tanh(gates * mult)   # ONE EUP pass covering all four gate chunks
        s_all = 0.5 * t_all + 0.5        # sigmoid chunks recovered on the VPU
        i_g = s_all[:, 0:H]
        f_g = s_all[:, H:2 * H]
        g_g = t_all[:, 2 * H:3 * H]
        o_g = s_all[:, 3 * H:4 * H]
        c = f_g * c + i_g * g_g
        h = o_g * jnp.tanh(c)            # second (and last) EUP op per step

    # ---- Decoder + 2-class log_softmax via the logit difference only. ----
    w_diff = fp_ref[1:2, 0:H]                                    # [1, H]
    b_diff = fp_ref[2:3, 0:1]                                    # [1, 1]
    diff = jnp.sum(h * w_diff, axis=-1, keepdims=True) + b_diff  # d1 - d0, [1, 1]
    softplus = lambda x: jnp.maximum(x, 0.0) + jnp.log(1.0 + jnp.exp(-jnp.abs(x)))
    out_ref[...] = jnp.concatenate([-softplus(diff), -softplus(-diff)], axis=-1)  # [1,2]


@jax.jit
def linguo_forward(token_ids, emb_b, wpack, fparams):
    """Returns log-probabilities of shape [1, 2] (== F.log_softmax(hidden2dec(h_T)))."""
    ids = token_ids.astype(jnp.int32)
    vmem = pl.BlockSpec(memory_space=pltpu.MemorySpace.VMEM)
    smem = pl.BlockSpec(memory_space=pltpu.MemorySpace.SMEM)
    return pl.pallas_call(
        linguo_kernel,
        out_shape=jax.ShapeDtypeStruct((1, 2), jnp.float32),
        in_specs=[smem, vmem, vmem, vmem],
        out_specs=vmem,
    )(ids, emb_b, wpack, fparams)


def init_params(key, vocab_size, embedding_dim, hidden_dim):
    """Deterministic init; shapes mirror nn.Embedding / nn.LSTM / nn.Linear.

    LSTM weights stored pre-transposed ([E,4H], [H,4H]) with PyTorch gate order
    (i, f, g, o); the two LSTM biases are pre-summed.  Decoder weight kept in
    PyTorch's native [out=2, in=H] layout.
    """
    k_emb, k_wih, k_whh, k_bih, k_bhh, k_wd, k_bd = jax.random.split(key, 7)
    E, H, V = embedding_dim, hidden_dim, vocab_size
    s = 1.0 / math.sqrt(H)
    embedding = jax.random.normal(k_emb, (V, E), jnp.float32)
    w_ih = jax.random.uniform(k_wih, (E, 4 * H), jnp.float32, -s, s)
    w_hh = jax.random.uniform(k_whh, (H, 4 * H), jnp.float32, -s, s)
    b_ih = jax.random.uniform(k_bih, (1, 4 * H), jnp.float32, -s, s)
    b_hh = jax.random.uniform(k_bhh, (1, 4 * H), jnp.float32, -s, s)
    b = b_ih + b_hh
    w_dec = jax.random.uniform(k_wd, (2, H), jnp.float32, -s, s)
    b_dec = jax.random.uniform(k_bd, (2, 1), jnp.float32, -s, s)
    return embedding, w_ih, w_hh, b, w_dec, b_dec


def pack_params(embedding, w_ih, w_hh, b, w_dec, b_dec):
    """One-time pre-cast / pre-pack of parameters into the 3 kernel operand blocks."""
    V, E = embedding.shape
    H = w_hh.shape[0]
    emb_b = embedding.astype(jnp.bfloat16).reshape(V, 1, E)          # [V, 1, E] bf16
    wpack = jnp.concatenate([w_ih, w_hh], axis=0).astype(jnp.bfloat16)  # [E+H, 4H] bf16
    fparams = jnp.zeros((3, 4 * H), jnp.float32)
    fparams = fparams.at[0, :].set(b.reshape(-1))                    # summed LSTM bias
    fparams = fparams.at[1, :H].set(w_dec[1] - w_dec[0])             # decoder weight diff
    fparams = fparams.at[2, 0].set(b_dec[1, 0] - b_dec[0, 0])        # decoder bias diff
    return emb_b, wpack, fparams


if __name__ == "__main__":
    vocab_size = 50
    embedding_dim = 16
    hidden_dim = 32      # 4H = 128 -> gate block exactly one lane-width
    seq_len = 8

    key = jax.random.PRNGKey(0)
    k_params, k_ids = jax.random.split(key)
    params = init_params(k_params, vocab_size, embedding_dim, hidden_dim)
    packed = pack_params(*params)
    token_ids = jax.random.randint(k_ids, (seq_len,), 0, vocab_size, jnp.int32)

    out = linguo_forward(token_ids, *packed)
    jax.block_until_ready(out)

    assert out.shape == (1, 2)
    # log-probs must (approximately) exponentiate-sum to 1
    assert abs(float(jnp.sum(jnp.exp(out))) - 1.0) < 1e-4
    print("KERNEL_OK")
</pallas_src>

<mosaic_0001>
module attributes {stable_mosaic.version = 11 : i64} {
  func.func @linguo_kernel(%arg0: memref<8xi32, #tpu.memory_space<smem>>, %arg1: memref<50x1x16xbf16, #tpu.memory_space<vmem>>, %arg2: memref<48x128xbf16, #tpu.memory_space<vmem>>, %arg3: memref<3x128xf32, #tpu.memory_space<vmem>>, %arg4: memref<1x2xf32, #tpu.memory_space<vmem>>) attributes {dimension_semantics = [], scalar_prefetch = 0 : i64, scratch_operands = 0 : i64, tpu.core_type = #tpu.core_type<tc>} {
    %c0 = arith.constant 0 : index
    %0 = memref.load %arg0[%c0] : memref<8xi32, #tpu.memory_space<smem>>
    %c0_i32 = arith.constant 0 : i32
    %c49_i32 = arith.constant 49 : i32
    %1 = arith.maxsi %c0_i32, %0 : i32
    %2 = arith.minsi %c49_i32, %1 : i32
    %3 = arith.index_cast %2 : i32 to index
    %c0_0 = arith.constant 0 : index
    %c0_1 = arith.constant 0 : index
    %4 = vector.load %arg1[%3, %c0_0, %c0_1] : memref<50x1x16xbf16, #tpu.memory_space<vmem>>, vector<1x1x16xbf16>
    %5 = vector.shape_cast %4 : vector<1x1x16xbf16> to vector<1x16xbf16>
    %6 = arith.extf %5 : vector<1x16xbf16> to vector<1x16xf32>
    %c1 = arith.constant 1 : index
    %7 = memref.load %arg0[%c1] : memref<8xi32, #tpu.memory_space<smem>>
    %c0_i32_2 = arith.constant 0 : i32
    %c49_i32_3 = arith.constant 49 : i32
    %8 = arith.maxsi %c0_i32_2, %7 : i32
    %9 = arith.minsi %c49_i32_3, %8 : i32
    %10 = arith.index_cast %9 : i32 to index
    %c0_4 = arith.constant 0 : index
    %c0_5 = arith.constant 0 : index
    %11 = vector.load %arg1[%10, %c0_4, %c0_5] : memref<50x1x16xbf16, #tpu.memory_space<vmem>>, vector<1x1x16xbf16>
    %12 = vector.shape_cast %11 : vector<1x1x16xbf16> to vector<1x16xbf16>
    %13 = arith.extf %12 : vector<1x16xbf16> to vector<1x16xf32>
    %c2 = arith.constant 2 : index
    %14 = memref.load %arg0[%c2] : memref<8xi32, #tpu.memory_space<smem>>
    %c0_i32_6 = arith.constant 0 : i32
    %c49_i32_7 = arith.constant 49 : i32
    %15 = arith.maxsi %c0_i32_6, %14 : i32
    %16 = arith.minsi %c49_i32_7, %15 : i32
    %17 = arith.index_cast %16 : i32 to index
    %c0_8 = arith.constant 0 : index
    %c0_9 = arith.constant 0 : index
    %18 = vector.load %arg1[%17, %c0_8, %c0_9] : memref<50x1x16xbf16, #tpu.memory_space<vmem>>, vector<1x1x16xbf16>
    %19 = vector.shape_cast %18 : vector<1x1x16xbf16> to vector<1x16xbf16>
    %20 = arith.extf %19 : vector<1x16xbf16> to vector<1x16xf32>
    %c3 = arith.constant 3 : index
    %21 = memref.load %arg0[%c3] : memref<8xi32, #tpu.memory_space<smem>>
    %c0_i32_10 = arith.constant 0 : i32
    %c49_i32_11 = arith.constant 49 : i32
    %22 = arith.maxsi %c0_i32_10, %21 : i32
    %23 = arith.minsi %c49_i32_11, %22 : i32
    %24 = arith.index_cast %23 : i32 to index
    %c0_12 = arith.constant 0 : index
    %c0_13 = arith.constant 0 : index
    %25 = vector.load %arg1[%24, %c0_12, %c0_13] : memref<50x1x16xbf16, #tpu.memory_space<vmem>>, vector<1x1x16xbf16>
    %26 = vector.shape_cast %25 : vector<1x1x16xbf16> to vector<1x16xbf16>
    %27 = arith.extf %26 : vector<1x16xbf16> to vector<1x16xf32>
    %c4 = arith.constant 4 : index
    %28 = memref.load %arg0[%c4] : memref<8xi32, #tpu.memory_space<smem>>
    %c0_i32_14 = arith.constant 0 : i32
    %c49_i32_15 = arith.constant 49 : i32
    %29 = arith.maxsi %c0_i32_14, %28 : i32
    %30 = arith.minsi %c49_i32_15, %29 : i32
    %31 = arith.index_cast %30 : i32 to index
    %c0_16 = arith.constant 0 : index
    %c0_17 = arith.constant 0 : index
    %32 = vector.load %arg1[%31, %c0_16, %c0_17] : memref<50x1x16xbf16, #tpu.memory_space<vmem>>, vector<1x1x16xbf16>
    %33 = vector.shape_cast %32 : vector<1x1x16xbf16> to vector<1x16xbf16>
    %34 = arith.extf %33 : vector<1x16xbf16> to vector<1x16xf32>
    %c5 = arith.constant 5 : index
    %35 = memref.load %arg0[%c5] : memref<8xi32, #tpu.memory_space<smem>>
    %c0_i32_18 = arith.constant 0 : i32
    %c49_i32_19 = arith.constant 49 : i32
    %36 = arith.maxsi %c0_i32_18, %35 : i32
    %37 = arith.minsi %c49_i32_19, %36 : i32
    %38 = arith.index_cast %37 : i32 to index
    %c0_20 = arith.constant 0 : index
    %c0_21 = arith.constant 0 : index
    %39 = vector.load %arg1[%38, %c0_20, %c0_21] : memref<50x1x16xbf16, #tpu.memory_space<vmem>>, vector<1x1x16xbf16>
    %40 = vector.shape_cast %39 : vector<1x1x16xbf16> to vector<1x16xbf16>
    %41 = arith.extf %40 : vector<1x16xbf16> to vector<1x16xf32>
    %c6 = arith.constant 6 : index
    %42 = memref.load %arg0[%c6] : memref<8xi32, #tpu.memory_space<smem>>
    %c0_i32_22 = arith.constant 0 : i32
    %c49_i32_23 = arith.constant 49 : i32
    %43 = arith.maxsi %c0_i32_22, %42 : i32
    %44 = arith.minsi %c49_i32_23, %43 : i32
    %45 = arith.index_cast %44 : i32 to index
    %c0_24 = arith.constant 0 : index
    %c0_25 = arith.constant 0 : index
    %46 = vector.load %arg1[%45, %c0_24, %c0_25] : memref<50x1x16xbf16, #tpu.memory_space<vmem>>, vector<1x1x16xbf16>
    %47 = vector.shape_cast %46 : vector<1x1x16xbf16> to vector<1x16xbf16>
    %48 = arith.extf %47 : vector<1x16xbf16> to vector<1x16xf32>
    %c7 = arith.constant 7 : index
    %49 = memref.load %arg0[%c7] : memref<8xi32, #tpu.memory_space<smem>>
    %c0_i32_26 = arith.constant 0 : i32
    %c49_i32_27 = arith.constant 49 : i32
    %50 = arith.maxsi %c0_i32_26, %49 : i32
    %51 = arith.minsi %c49_i32_27, %50 : i32
    %52 = arith.index_cast %51 : i32 to index
    %c0_28 = arith.constant 0 : index
    %c0_29 = arith.constant 0 : index
    %53 = vector.load %arg1[%52, %c0_28, %c0_29] : memref<50x1x16xbf16, #tpu.memory_space<vmem>>, vector<1x1x16xbf16>
    %54 = vector.shape_cast %53 : vector<1x1x16xbf16> to vector<1x16xbf16>
    %55 = arith.extf %54 : vector<1x16xbf16> to vector<1x16xf32>
    %56 = tpu.concatenate %6, %13, %20, %27, %34, %41, %48, %55 in 0 : vector<1x16xf32>, vector<1x16xf32>, vector<1x16xf32>, vector<1x16xf32>, vector<1x16xf32>, vector<1x16xf32>, vector<1x16xf32>, vector<1x16xf32> -> vector<8x16xf32>
    %c0_30 = arith.constant 0 : index
    %c0_31 = arith.constant 0 : index
    %57 = vector.load %arg2[%c0_30, %c0_31] : memref<48x128xbf16, #tpu.memory_space<vmem>>, vector<16x128xbf16>
    %c16 = arith.constant 16 : index
    %c0_32 = arith.constant 0 : index
    %58 = vector.load %arg2[%c16, %c0_32] : memref<48x128xbf16, #tpu.memory_space<vmem>>, vector<32x128xbf16>
    %c0_33 = arith.constant 0 : index
    %c0_34 = arith.constant 0 : index
    %59 = vector.load %arg3[%c0_33, %c0_34] : memref<3x128xf32, #tpu.memory_space<vmem>>, vector<1x128xf32>
    %60 = arith.truncf %56 : vector<8x16xf32> to vector<8x16xbf16>
    %cst = arith.constant dense<0.000000e+00> : vector<8x128xf32>
    %61 = tpu.matmul %60, %57, %cst {dimension_numbers = #tpu.dot_dimension_numbers<[1], [0], [0], [1], [0, 0, 1, 1], [], []>} : vector<8x16xbf16>, vector<16x128xbf16>, vector<8x128xf32> -> vector<8x128xf32>
    %62 = vector.broadcast %59 : vector<1x128xf32> to vector<8x128xf32>
    %63 = arith.addf %61, %62 : vector<8x128xf32>
    %64 = tpu.iota {dimensions = array<i32: 1>} : vector<1x128xi32>
    %c64_i32 = arith.constant 64 : i32
    %65 = vector.broadcast %c64_i32 : i32 to vector<1x128xi32>
    %66 = arith.cmpi sge, %64, %65 : vector<1x128xi32>
    %c96_i32 = arith.constant 96 : i32
    %67 = vector.broadcast %c96_i32 : i32 to vector<1x128xi32>
    %68 = arith.cmpi slt, %64, %67 : vector<1x128xi32>
    %69 = arith.andi %66, %68 : vector<1x128xi1>
    %cst_35 = arith.constant 1.000000e+00 : f32
    %cst_36 = arith.constant 5.000000e-01 : f32
    %70 = vector.broadcast %cst_35 : f32 to vector<1x128xf32>
    %71 = vector.broadcast %cst_36 : f32 to vector<1x128xf32>
    %72 = arith.select %69, %70, %71 : vector<1x128xi1>, vector<1x128xf32>
    %cst_37 = arith.constant 0.000000e+00 : f32
    %73 = vector.broadcast %cst_37 : f32 to vector<1x32xf32>
    %cst_38 = arith.constant 0.000000e+00 : f32
    %74 = vector.broadcast %cst_38 : f32 to vector<1x32xf32>
    %75 = vector.extract_strided_slice %63 {offsets = [0, 0], sizes = [1, 128], strides = [1, 1]} : vector<8x128xf32> to vector<1x128xf32>
    %76 = arith.truncf %73 : vector<1x32xf32> to vector<1x32xbf16>
    %cst_39 = arith.constant dense<0.000000e+00> : vector<1x128xf32>
    %77 = tpu.matmul %76, %58, %cst_39 {dimension_numbers = #tpu.dot_dimension_numbers<[1], [0], [0], [1], [0, 0, 1, 1], [], []>} : vector<1x32xbf16>, vector<32x128xbf16>, vector<1x128xf32> -> vector<1x128xf32>
    %78 = arith.addf %75, %77 : vector<1x128xf32>
    %79 = arith.mulf %78, %72 : vector<1x128xf32>
    %80 = math.tanh %79 : vector<1x128xf32>
    %cst_40 = arith.constant 5.000000e-01 : f32
    %81 = vector.broadcast %cst_40 : f32 to vector<1x128xf32>
    %82 = arith.mulf %81, %80 : vector<1x128xf32>
    %cst_41 = arith.constant 5.000000e-01 : f32
    %83 = vector.broadcast %cst_41 : f32 to vector<1x128xf32>
    %84 = arith.addf %82, %83 : vector<1x128xf32>
    %85 = vector.extract_strided_slice %84 {offsets = [0, 0], sizes = [1, 32], strides = [1, 1]} : vector<1x128xf32> to vector<1x32xf32>
    %86 = vector.extract_strided_slice %84 {offsets = [0, 32], sizes = [1, 32], strides = [1, 1]} : vector<1x128xf32> to vector<1x32xf32>
    %87 = vector.extract_strided_slice %80 {offsets = [0, 64], sizes = [1, 32], strides = [1, 1]} : vector<1x128xf32> to vector<1x32xf32>
    %88 = vector.extract_strided_slice %84 {offsets = [0, 96], sizes = [1, 32], strides = [1, 1]} : vector<1x128xf32> to vector<1x32xf32>
    %89 = arith.mulf %86, %74 : vector<1x32xf32>
    %90 = arith.mulf %85, %87 : vector<1x32xf32>
    %91 = arith.addf %89, %90 : vector<1x32xf32>
    %92 = math.tanh %91 : vector<1x32xf32>
    %93 = arith.mulf %88, %92 : vector<1x32xf32>
    %94 = vector.extract_strided_slice %63 {offsets = [1, 0], sizes = [1, 128], strides = [1, 1]} : vector<8x128xf32> to vector<1x128xf32>
    %95 = arith.truncf %93 : vector<1x32xf32> to vector<1x32xbf16>
    %cst_42 = arith.constant dense<0.000000e+00> : vector<1x128xf32>
    %96 = tpu.matmul %95, %58, %cst_42 {dimension_numbers = #tpu.dot_dimension_numbers<[1], [0], [0], [1], [0, 0, 1, 1], [], []>} : vector<1x32xbf16>, vector<32x128xbf16>, vector<1x128xf32> -> vector<1x128xf32>
    %97 = arith.addf %94, %96 : vector<1x128xf32>
    %98 = arith.mulf %97, %72 : vector<1x128xf32>
    %99 = math.tanh %98 : vector<1x128xf32>
    %cst_43 = arith.constant 5.000000e-01 : f32
    %100 = vector.broadcast %cst_43 : f32 to vector<1x128xf32>
    %101 = arith.mulf %100, %99 : vector<1x128xf32>
    %cst_44 = arith.constant 5.000000e-01 : f32
    %102 = vector.broadcast %cst_44 : f32 to vector<1x128xf32>
    %103 = arith.addf %101, %102 : vector<1x128xf32>
    %104 = vector.extract_strided_slice %103 {offsets = [0, 0], sizes = [1, 32], strides = [1, 1]} : vector<1x128xf32> to vector<1x32xf32>
    %105 = vector.extract_strided_slice %103 {offsets = [0, 32], sizes = [1, 32], strides = [1, 1]} : vector<1x128xf32> to vector<1x32xf32>
    %106 = vector.extract_strided_slice %99 {offsets = [0, 64], sizes = [1, 32], strides = [1, 1]} : vector<1x128xf32> to vector<1x32xf32>
    %107 = vector.extract_strided_slice %103 {offsets = [0, 96], sizes = [1, 32], strides = [1, 1]} : vector<1x128xf32> to vector<1x32xf32>
    %108 = arith.mulf %105, %91 : vector<1x32xf32>
    %109 = arith.mulf %104, %106 : vector<1x32xf32>
    %110 = arith.addf %108, %109 : vector<1x32xf32>
    %111 = math.tanh %110 : vector<1x32xf32>
    %112 = arith.mulf %107, %111 : vector<1x32xf32>
    %113 = vector.extract_strided_slice %63 {offsets = [2, 0], sizes = [1, 128], strides = [1, 1]} : vector<8x128xf32> to vector<1x128xf32>
    %114 = arith.truncf %112 : vector<1x32xf32> to vector<1x32xbf16>
    %cst_45 = arith.constant dense<0.000000e+00> : vector<1x128xf32>
    %115 = tpu.matmul %114, %58, %cst_45 {dimension_numbers = #tpu.dot_dimension_numbers<[1], [0], [0], [1], [0, 0, 1, 1], [], []>} : vector<1x32xbf16>, vector<32x128xbf16>, vector<1x128xf32> -> vector<1x128xf32>
    %116 = arith.addf %113, %115 : vector<1x128xf32>
    %117 = arith.mulf %116, %72 : vector<1x128xf32>
    %118 = math.tanh %117 : vector<1x128xf32>
    %cst_46 = arith.constant 5.000000e-01 : f32
    %119 = vector.broadcast %cst_46 : f32 to vector<1x128xf32>
    %120 = arith.mulf %119, %118 : vector<1x128xf32>
    %cst_47 = arith.constant 5.000000e-01 : f32
    %121 = vector.broadcast %cst_47 : f32 to vector<1x128xf32>
    %122 = arith.addf %120, %121 : vector<1x128xf32>
    %123 = vector.extract_strided_slice %122 {offsets = [0, 0], sizes = [1, 32], strides = [1, 1]} : vector<1x128xf32> to vector<1x32xf32>
    %124 = vector.extract_strided_slice %122 {offsets = [0, 32], sizes = [1, 32], strides = [1, 1]} : vector<1x128xf32> to vector<1x32xf32>
    %125 = vector.extract_strided_slice %118 {offsets = [0, 64], sizes = [1, 32], strides = [1, 1]} : vector<1x128xf32> to vector<1x32xf32>
    %126 = vector.extract_strided_slice %122 {offsets = [0, 96], sizes = [1, 32], strides = [1, 1]} : vector<1x128xf32> to vector<1x32xf32>
    %127 = arith.mulf %124, %110 : vector<1x32xf32>
    %128 = arith.mulf %123, %125 : vector<1x32xf32>
    %129 = arith.addf %127, %128 : vector<1x32xf32>
    %130 = math.tanh %129 : vector<1x32xf32>
    %131 = arith.mulf %126, %130 : vector<1x32xf32>
    %132 = vector.extract_strided_slice %63 {offsets = [3, 0], sizes = [1, 128], strides = [1, 1]} : vector<8x128xf32> to vector<1x128xf32>
    %133 = arith.truncf %131 : vector<1x32xf32> to vector<1x32xbf16>
    %cst_48 = arith.constant dense<0.000000e+00> : vector<1x128xf32>
    %134 = tpu.matmul %133, %58, %cst_48 {dimension_numbers = #tpu.dot_dimension_numbers<[1], [0], [0], [1], [0, 0, 1, 1], [], []>} : vector<1x32xbf16>, vector<32x128xbf16>, vector<1x128xf32> -> vector<1x128xf32>
    %135 = arith.addf %132, %134 : vector<1x128xf32>
    %136 = arith.mulf %135, %72 : vector<1x128xf32>
    %137 = math.tanh %136 : vector<1x128xf32>
    %cst_49 = arith.constant 5.000000e-01 : f32
    %138 = vector.broadcast %cst_49 : f32 to vector<1x128xf32>
    %139 = arith.mulf %138, %137 : vector<1x128xf32>
    %cst_50 = arith.constant 5.000000e-01 : f32
    %140 = vector.broadcast %cst_50 : f32 to vector<1x128xf32>
    %141 = arith.addf %139, %140 : vector<1x128xf32>
    %142 = vector.extract_strided_slice %141 {offsets = [0, 0], sizes = [1, 32], strides = [1, 1]} : vector<1x128xf32> to vector<1x32xf32>
    %143 = vector.extract_strided_slice %141 {offsets = [0, 32], sizes = [1, 32], strides = [1, 1]} : vector<1x128xf32> to vector<1x32xf32>
    %144 = vector.extract_strided_slice %137 {offsets = [0, 64], sizes = [1, 32], strides = [1, 1]} : vector<1x128xf32> to vector<1x32xf32>
    %145 = vector.extract_strided_slice %141 {offsets = [0, 96], sizes = [1, 32], strides = [1, 1]} : vector<1x128xf32> to vector<1x32xf32>
    %146 = arith.mulf %143, %129 : vector<1x32xf32>
    %147 = arith.mulf %142, %144 : vector<1x32xf32>
    %148 = arith.addf %146, %147 : vector<1x32xf32>
    %149 = math.tanh %148 : vector<1x32xf32>
    %150 = arith.mulf %145, %149 : vector<1x32xf32>
    %151 = vector.extract_strided_slice %63 {offsets = [4, 0], sizes = [1, 128], strides = [1, 1]} : vector<8x128xf32> to vector<1x128xf32>
    %152 = arith.truncf %150 : vector<1x32xf32> to vector<1x32xbf16>
    %cst_51 = arith.constant dense<0.000000e+00> : vector<1x128xf32>
    %153 = tpu.matmul %152, %58, %cst_51 {dimension_numbers = #tpu.dot_dimension_numbers<[1], [0], [0], [1], [0, 0, 1, 1], [], []>} : vector<1x32xbf16>, vector<32x128xbf16>, vector<1x128xf32> -> vector<1x128xf32>
    %154 = arith.addf %151, %153 : vector<1x128xf32>
    %155 = arith.mulf %154, %72 : vector<1x128xf32>
    %156 = math.tanh %155 : vector<1x128xf32>
    %cst_52 = arith.constant 5.000000e-01 : f32
    %157 = vector.broadcast %cst_52 : f32 to vector<1x128xf32>
    %158 = arith.mulf %157, %156 : vector<1x128xf32>
    %cst_53 = arith.constant 5.000000e-01 : f32
    %159 = vector.broadcast %cst_53 : f32 to vector<1x128xf32>
    %160 = arith.addf %158, %159 : vector<1x128xf32>
    %161 = vector.extract_strided_slice %160 {offsets = [0, 0], sizes = [1, 32], strides = [1, 1]} : vector<1x128xf32> to vector<1x32xf32>
    %162 = vector.extract_strided_slice %160 {offsets = [0, 32], sizes = [1, 32], strides = [1, 1]} : vector<1x128xf32> to vector<1x32xf32>
    %163 = vector.extract_strided_slice %156 {offsets = [0, 64], sizes = [1, 32], strides = [1, 1]} : vector<1x128xf32> to vector<1x32xf32>
    %164 = vector.extract_strided_slice %160 {offsets = [0, 96], sizes = [1, 32], strides = [1, 1]} : vector<1x128xf32> to vector<1x32xf32>
    %165 = arith.mulf %162, %148 : vector<1x32xf32>
    %166 = arith.mulf %161, %163 : vector<1x32xf32>
    %167 = arith.addf %165, %166 : vector<1x32xf32>
    %168 = math.tanh %167 : vector<1x32xf32>
    %169 = arith.mulf %164, %168 : vector<1x32xf32>
    %170 = vector.extract_strided_slice %63 {offsets = [5, 0], sizes = [1, 128], strides = [1, 1]} : vector<8x128xf32> to vector<1x128xf32>
    %171 = arith.truncf %169 : vector<1x32xf32> to vector<1x32xbf16>
    %cst_54 = arith.constant dense<0.000000e+00> : vector<1x128xf32>
    %172 = tpu.matmul %171, %58, %cst_54 {dimension_numbers = #tpu.dot_dimension_numbers<[1], [0], [0], [1], [0, 0, 1, 1], [], []>} : vector<1x32xbf16>, vector<32x128xbf16>, vector<1x128xf32> -> vector<1x128xf32>
    %173 = arith.addf %170, %172 : vector<1x128xf32>
    %174 = arith.mulf %173, %72 : vector<1x128xf32>
    %175 = math.tanh %174 : vector<1x128xf32>
    %cst_55 = arith.constant 5.000000e-01 : f32
    %176 = vector.broadcast %cst_55 : f32 to vector<1x128xf32>
    %177 = arith.mulf %176, %175 : vector<1x128xf32>
    %cst_56 = arith.constant 5.000000e-01 : f32
    %178 = vector.broadcast %cst_56 : f32 to vector<1x128xf32>
    %179 = arith.addf %177, %178 : vector<1x128xf32>
    %180 = vector.extract_strided_slice %179 {offsets = [0, 0], sizes = [1, 32], strides = [1, 1]} : vector<1x128xf32> to vector<1x32xf32>
    %181 = vector.extract_strided_slice %179 {offsets = [0, 32], sizes = [1, 32], strides = [1, 1]} : vector<1x128xf32> to vector<1x32xf32>
    %182 = vector.extract_strided_slice %175 {offsets = [0, 64], sizes = [1, 32], strides = [1, 1]} : vector<1x128xf32> to vector<1x32xf32>
    %183 = vector.extract_strided_slice %179 {offsets = [0, 96], sizes = [1, 32], strides = [1, 1]} : vector<1x128xf32> to vector<1x32xf32>
    %184 = arith.mulf %181, %167 : vector<1x32xf32>
    %185 = arith.mulf %180, %182 : vector<1x32xf32>
    %186 = arith.addf %184, %185 : vector<1x32xf32>
    %187 = math.tanh %186 : vector<1x32xf32>
    %188 = arith.mulf %183, %187 : vector<1x32xf32>
    %189 = vector.extract_strided_slice %63 {offsets = [6, 0], sizes = [1, 128], strides = [1, 1]} : vector<8x128xf32> to vector<1x128xf32>
    %190 = arith.truncf %188 : vector<1x32xf32> to vector<1x32xbf16>
    %cst_57 = arith.constant dense<0.000000e+00> : vector<1x128xf32>
    %191 = tpu.matmul %190, %58, %cst_57 {dimension_numbers = #tpu.dot_dimension_numbers<[1], [0], [0], [1], [0, 0, 1, 1], [], []>} : vector<1x32xbf16>, vector<32x128xbf16>, vector<1x128xf32> -> vector<1x128xf32>
    %192 = arith.addf %189, %191 : vector<1x128xf32>
    %193 = arith.mulf %192, %72 : vector<1x128xf32>
    %194 = math.tanh %193 : vector<1x128xf32>
    %cst_58 = arith.constant 5.000000e-01 : f32
    %195 = vector.broadcast %cst_58 : f32 to vector<1x128xf32>
    %196 = arith.mulf %195, %194 : vector<1x128xf32>
    %cst_59 = arith.constant 5.000000e-01 : f32
    %197 = vector.broadcast %cst_59 : f32 to vector<1x128xf32>
    %198 = arith.addf %196, %197 : vector<1x128xf32>
    %199 = vector.extract_strided_slice %198 {offsets = [0, 0], sizes = [1, 32], strides = [1, 1]} : vector<1x128xf32> to vector<1x32xf32>
    %200 = vector.extract_strided_slice %198 {offsets = [0, 32], sizes = [1, 32], strides = [1, 1]} : vector<1x128xf32> to vector<1x32xf32>
    %201 = vector.extract_strided_slice %194 {offsets = [0, 64], sizes = [1, 32], strides = [1, 1]} : vector<1x128xf32> to vector<1x32xf32>
    %202 = vector.extract_strided_slice %198 {offsets = [0, 96], sizes = [1, 32], strides = [1, 1]} : vector<1x128xf32> to vector<1x32xf32>
    %203 = arith.mulf %200, %186 : vector<1x32xf32>
    %204 = arith.mulf %199, %201 : vector<1x32xf32>
    %205 = arith.addf %203, %204 : vector<1x32xf32>
    %206 = math.tanh %205 : vector<1x32xf32>
    %207 = arith.mulf %202, %206 : vector<1x32xf32>
    %208 = vector.extract_strided_slice %63 {offsets = [7, 0], sizes = [1, 128], strides = [1, 1]} : vector<8x128xf32> to vector<1x128xf32>
    %209 = arith.truncf %207 : vector<1x32xf32> to vector<1x32xbf16>
    %cst_60 = arith.constant dense<0.000000e+00> : vector<1x128xf32>
    %210 = tpu.matmul %209, %58, %cst_60 {dimension_numbers = #tpu.dot_dimension_numbers<[1], [0], [0], [1], [0, 0, 1, 1], [], []>} : vector<1x32xbf16>, vector<32x128xbf16>, vector<1x128xf32> -> vector<1x128xf32>
    %211 = arith.addf %208, %210 : vector<1x128xf32>
    %212 = arith.mulf %211, %72 : vector<1x128xf32>
    %213 = math.tanh %212 : vector<1x128xf32>
    %cst_61 = arith.constant 5.000000e-01 : f32
    %214 = vector.broadcast %cst_61 : f32 to vector<1x128xf32>
    %215 = arith.mulf %214, %213 : vector<1x128xf32>
    %cst_62 = arith.constant 5.000000e-01 : f32
    %216 = vector.broadcast %cst_62 : f32 to vector<1x128xf32>
    %217 = arith.addf %215, %216 : vector<1x128xf32>
    %218 = vector.extract_strided_slice %217 {offsets = [0, 0], sizes = [1, 32], strides = [1, 1]} : vector<1x128xf32> to vector<1x32xf32>
    %219 = vector.extract_strided_slice %217 {offsets = [0, 32], sizes = [1, 32], strides = [1, 1]} : vector<1x128xf32> to vector<1x32xf32>
    %220 = vector.extract_strided_slice %213 {offsets = [0, 64], sizes = [1, 32], strides = [1, 1]} : vector<1x128xf32> to vector<1x32xf32>
    %221 = vector.extract_strided_slice %217 {offsets = [0, 96], sizes = [1, 32], strides = [1, 1]} : vector<1x128xf32> to vector<1x32xf32>
    %222 = arith.mulf %219, %205 : vector<1x32xf32>
    %223 = arith.mulf %218, %220 : vector<1x32xf32>
    %224 = arith.addf %222, %223 : vector<1x32xf32>
    %225 = math.tanh %224 : vector<1x32xf32>
    %226 = arith.mulf %221, %225 : vector<1x32xf32>
    %c1_63 = arith.constant 1 : index
    %c0_64 = arith.constant 0 : index
    %227 = vector.load %arg3[%c1_63, %c0_64] : memref<3x128xf32, #tpu.memory_space<vmem>>, vector<1x32xf32>
    %c2_65 = arith.constant 2 : index
    %c0_66 = arith.constant 0 : index
    %228 = vector.load %arg3[%c2_65, %c0_66] : memref<3x128xf32, #tpu.memory_space<vmem>>, vector<1x1xf32>
    %229 = arith.mulf %226, %227 : vector<1x32xf32>
    %cst_67 = arith.constant dense<0.000000e+00> : vector<1xf32>
    %230 = vector.multi_reduction <add>, %229, %cst_67 [1] : vector<1x32xf32> to vector<1xf32>
    %231 = vector.shape_cast %230 : vector<1xf32> to vector<1x1xf32>
    %232 = arith.addf %231, %228 : vector<1x1xf32>
    %cst_68 = arith.constant 0.000000e+00 : f32
    %233 = vector.broadcast %cst_68 : f32 to vector<1x1xf32>
    %234 = arith.maximumf %232, %233 : vector<1x1xf32>
    %235 = math.absf %232 : vector<1x1xf32>
    %cst_69 = arith.constant 0.000000e+00 : f32
    %236 = vector.broadcast %cst_69 : f32 to vector<1x1xf32>
    %237 = arith.subf %236, %235 : vector<1x1xf32>
    %238 = math.exp %237 : vector<1x1xf32>
    %cst_70 = arith.constant 1.000000e+00 : f32
    %239 = vector.broadcast %cst_70 : f32 to vector<1x1xf32>
    %240 = arith.addf %239, %238 : vector<1x1xf32>
    %241 = math.log %240 : vector<1x1xf32>
    %242 = arith.addf %234, %241 : vector<1x1xf32>
    %cst_71 = arith.constant 0.000000e+00 : f32
    %243 = vector.broadcast %cst_71 : f32 to vector<1x1xf32>
    %244 = arith.subf %243, %242 : vector<1x1xf32>
    %cst_72 = arith.constant 0.000000e+00 : f32
    %245 = vector.broadcast %cst_72 : f32 to vector<1x1xf32>
    %246 = arith.subf %245, %232 : vector<1x1xf32>
    %cst_73 = arith.constant 0.000000e+00 : f32
    %247 = vector.broadcast %cst_73 : f32 to vector<1x1xf32>
    %248 = arith.maximumf %246, %247 : vector<1x1xf32>
    %249 = math.absf %246 : vector<1x1xf32>
    %cst_74 = arith.constant 0.000000e+00 : f32
    %250 = vector.broadcast %cst_74 : f32 to vector<1x1xf32>
    %251 = arith.subf %250, %249 : vector<1x1xf32>
    %252 = math.exp %251 : vector<1x1xf32>
    %cst_75 = arith.constant 1.000000e+00 : f32
    %253 = vector.broadcast %cst_75 : f32 to vector<1x1xf32>
    %254 = arith.addf %253, %252 : vector<1x1xf32>
    %255 = math.log %254 : vector<1x1xf32>
    %256 = arith.addf %248, %255 : vector<1x1xf32>
    %cst_76 = arith.constant 0.000000e+00 : f32
    %257 = vector.broadcast %cst_76 : f32 to vector<1x1xf32>
    %258 = arith.subf %257, %256 : vector<1x1xf32>
    %259 = tpu.concatenate %244, %258 in 1 : vector<1x1xf32>, vector<1x1xf32> -> vector<1x2xf32>
    %c0_77 = arith.constant 0 : index
    %c0_78 = arith.constant 0 : index
    %260 = vector.load %arg4[%c0_77, %c0_78] : memref<1x2xf32, #tpu.memory_space<vmem>>, vector<1x2xf32>
    tpu.vector_store %arg4[%c0_77, %c0_78], %259 {strides = array<i32>} : memref<1x2xf32, #tpu.memory_space<vmem>>, vector<1x2xf32>,
    return
  }
}

</mosaic_0001>

<llo_original>
// kernel: linguo_forward.1
$region0: #{linguo_forward.1}
  #allocation0 [shape = 'u32[]', space=smem, size = 0x4, offset = 0x4, fixed_abs, tag = 'smem constant byte address 0x4 - core index']
  #allocation1 [shape = 'u32[144,128]{1,0:T(1,128)}', space=vmem, size = 0x12000, scoped, tag = 'internal scratch']
  %s0 = inlined_call_operand.vmem [shape: s32[8], index: 0, kind: input, shape index: {}]
  %s1 = inlined_call_operand.vmem [shape: bf16[50,1,16], index: 1, kind: input, shape index: {}]
  %s2 = inlined_call_operand.vmem [shape: bf16[48,128], index: 2, kind: input, shape index: {}]
  %s3 = inlined_call_operand.vmem [shape: f32[3,128], index: 3, kind: input, shape index: {}]
  %s4 = inlined_call_operand.hbm [shape: f32[1,2], index: 4, kind: output, shape index: {}]
  %s5 = sld [smem:[#allocation0]]
  $region30: #{linguo_forward.1} parent=0
    _
  %s7 = ssub.s32 1, %s5
  %s8 = scalar_select 0, %s7, %s5
  $region1: #{linguo_forward.1} parent=0
    #allocation2 [shape = 'u8[512]{0}', space=smem, size = 0x200, scoped, tag = 'input window, operand 0, single buffered']
    #allocation3 [shape = 's32[1]{0}', space=sflag, size = 0x4, scoped, tag = 'scoped memory for linguo_forward.1']
    #allocation4 [shape = 's32[1]{0}', space=sflag, size = 0x4, scoped, tag = 'scoped memory for linguo_forward.1']
    #allocation5 [shape = 'u8[512]{0}', space=vmem, size = 0x400, scoped, tag = 'output window, operand 0, single buffered']
    %9 = vsyncpa [#allocation4], 0
    %10 = vsyncpa [#allocation3], 0
    // Predicated region
    $region2: #{linguo_forward.1} parent=1 // pred_check
      _
    $region3: #{linguo_forward.1} parent=1 // pred_check_branch
      %12 = sbr.rel (0) target = $region5
    $region4: #{linguo_forward.1} parent=1 // pred_region
      %s14 = ssub.s32 16, 16
      %15 = vsyncadd [#allocation4], %s14
      %s17 = sshll.u32 %s0, 4
      %s18 = int_to_ptr.vmem [resolvable:$true] %s17
      %20 = dma.vmem_to_smem %s18, 16, [#allocation2], [#allocation4]
    $region5: #{linguo_forward.1} parent=1 // pred_fallthru
      _
    // Predicated region
    $region6: #{linguo_forward.1} parent=1 // pred_check
      _
    $region7: #{linguo_forward.1} parent=1 // pred_check_branch
      %22 = sbr.rel (0) target = $region9
    $region8: #{linguo_forward.1} parent=1 // pred_region
      _
    $region9: #{linguo_forward.1} parent=1 // pred_fallthru
      _
    // Predicated region
    $region10: #{linguo_forward.1} parent=1 // pred_check
      _
    $region11: #{linguo_forward.1} parent=1 // pred_check_branch
      %24 = sbr.rel (0) target = $region13
    $region12: #{linguo_forward.1} parent=1 // pred_region
      _
    $region13: #{linguo_forward.1} parent=1 // pred_fallthru
      _
    // Predicated region
    $region14: #{linguo_forward.1} parent=1 // pred_check
      _
    $region15: #{linguo_forward.1} parent=1 // pred_check_branch
      %26 = sbr.rel (0) target = $region17
    $region16: #{linguo_forward.1} parent=1 // pred_region
      _
    $region17: #{linguo_forward.1} parent=1 // pred_fallthru
      _
    // Predicated region
    $region18: #{linguo_forward.1} parent=1 // pred_check
      _
    $region19: #{linguo_forward.1} parent=1 // pred_check_branch
      %28 = sbr.rel (0) target = $region21
    $region20: #{linguo_forward.1} parent=1 // pred_region
      %29 = dma.done [#allocation4], 16
    $region21: #{linguo_forward.1} parent=1 // pred_fallthru
      _
    %30 = sfence
    %s32 = sld [smem:[#allocation2]]
    %p33 = scmp.gt.s32.totalorder %s32, 0
    %s34 = scalar_select %p33, %s32, 0
    %p35 = scmp.lt.s32.totalorder %s34, 49
    %s36 = scalar_select %p35, %s34, 49
    %s37 = scalar_lea.vmem %s1, %s36
    %v38 = vld [vmem:[%s37] sm:$0x1]
    %v39 = vunpack.c.l.bf16 %v38
    %s40 = sld [smem:[#allocation2 + $0x1]]
    %p41 = scmp.gt.s32.totalorder %s40, 0
    %s42 = scalar_select %p41, %s40, 0
    %p43 = scmp.lt.s32.totalorder %s42, 49
    %s44 = scalar_select %p43, %s42, 49
    %s45 = scalar_lea.vmem %s1, %s44
    %v46 = vld [vmem:[%s45] sm:$0x1]
    %v47 = vunpack.c.l.bf16 %v46
    %s48 = sld [smem:[#allocation2 + $0x2]]
    %p49 = scmp.gt.s32.totalorder %s48, 0
    %s50 = scalar_select %p49, %s48, 0
    %p51 = scmp.lt.s32.totalorder %s50, 49
    %s52 = scalar_select %p51, %s50, 49
    %s53 = scalar_lea.vmem %s1, %s52
    %v54 = vld [vmem:[%s53] sm:$0x1]
    %v55 = vunpack.c.l.bf16 %v54
    %s56 = sld [smem:[#allocation2 + $0x3]]
    %p57 = scmp.gt.s32.totalorder %s56, 0
    %s58 = scalar_select %p57, %s56, 0
    %p59 = scmp.lt.s32.totalorder %s58, 49
    %s60 = scalar_select %p59, %s58, 49
    %s61 = scalar_lea.vmem %s1, %s60
    %v62 = vld [vmem:[%s61] sm:$0x1]
    %v63 = vunpack.c.l.bf16 %v62
    %s64 = sld [smem:[#allocation2 + $0x4]]
    %p65 = scmp.gt.s32.totalorder %s64, 0
    %s66 = scalar_select %p65, %s64, 0
    %p67 = scmp.lt.s32.totalorder %s66, 49
    %s68 = scalar_select %p67, %s66, 49
    %s69 = scalar_lea.vmem %s1, %s68
    %v70 = vld [vmem:[%s69] sm:$0x1]
    %v71 = vunpack.c.l.bf16 %v70
    %s72 = sld [smem:[#allocation2 + $0x5]]
    %p73 = scmp.gt.s32.totalorder %s72, 0
    %s74 = scalar_select %p73, %s72, 0
    %p75 = scmp.lt.s32.totalorder %s74, 49
    %s76 = scalar_select %p75, %s74, 49
    %s77 = scalar_lea.vmem %s1, %s76
    %v78 = vld [vmem:[%s77] sm:$0x1]
    %v79 = vunpack.c.l.bf16 %v78
    %s80 = sld [smem:[#allocation2 + $0x6]]
    %p81 = scmp.gt.s32.totalorder %s80, 0
    %s82 = scalar_select %p81, %s80, 0
    %p83 = scmp.lt.s32.totalorder %s82, 49
    %s84 = scalar_select %p83, %s82, 49
    %s85 = scalar_lea.vmem %s1, %s84
    %v86 = vld [vmem:[%s85] sm:$0x1]
    %v87 = vunpack.c.l.bf16 %v86
    %s88 = sld [smem:[#allocation2 + $0x7]]
    %p89 = scmp.gt.s32.totalorder %s88, 0
    %s90 = scalar_select %p89, %s88, 0
    %p91 = scmp.lt.s32.totalorder %s90, 49
    %s92 = scalar_select %p91, %s90, 49
    %s93 = scalar_lea.vmem %s1, %s92
    %v94 = vld [vmem:[%s93] sm:$0x1]
    %v95 = vunpack.c.l.bf16 %v94
    %v97 = vlaneseq
    %v98 = vshrl.u32 %v97, 7
    %v99 = vsub.s32 0, %v98
    %v100 = vrot.slane %v47, %v99
    %v103 = vlaneseq
    %v104 = vshrl.u32 %v103, 7
    %v105 = vsub.s32 0, %v104
    %v106 = vrot.slane %v55, %v105
    %v109 = vlaneseq
    %v110 = vshrl.u32 %v109, 7
    %v111 = vsub.s32 0, %v110
    %v112 = vrot.slane %v63, %v111
    %v115 = vlaneseq
    %v116 = vshrl.u32 %v115, 7
    %v117 = vsub.s32 0, %v116
    %v118 = vrot.slane %v71, %v117
    %v121 = vlaneseq
    %v122 = vshrl.u32 %v121, 7
    %v123 = vsub.s32 0, %v122
    %v124 = vrot.slane %v79, %v123
    %v127 = vlaneseq
    %v128 = vshrl.u32 %v127, 7
    %v129 = vsub.s32 0, %v128
    %v130 = vrot.slane %v87, %v129
    %v133 = vlaneseq
    %v134 = vshrl.u32 %v133, 7
    %v135 = vsub.s32 0, %v134
    %v136 = vrot.slane %v95, %v135
    %vm138 = vcmask 1040384
    %v139 = vsel %vm138, %v39, %v100
    %vm140 = vcmask 1041408
    %v141 = vsel %vm140, %v139, %v106
    %vm142 = vcmask 1042432
    %v143 = vsel %vm142, %v141, %v112
    %vm144 = vcmask 1043456
    %v145 = vsel %vm144, %v143, %v118
    %vm146 = vcmask 1044480
    %v147 = vsel %vm146, %v145, %v124
    %vm148 = vcmask 1045504
    %v149 = vsel %vm148, %v147, %v130
    %vm150 = vcmask 1046528
    %v151 = vsel %vm150, %v149, %v136
    %v152 = vld [vmem:[%s2] sm:$0xf]
    %v153 = vld [vmem:[%s2 + $0x4] sm:$0xf]
    %v154 = vld [vmem:[%s2 + $0x8] sm:$0xf]
    %v155 = vld [vmem:[%s2 + $0xc] sm:$0xf]
    %v156 = vld [vmem:[%s2 + $0x10] sm:$0xf]
    %v157 = vld [vmem:[%s2 + $0x14] sm:$0xf]
    %v158 = vld [vmem:[%s3] sm:$0x1]
    %v159 = vpack.c.bf16 %v151, %v151
    %v160 = vlaneseq
    %v161 = vshrl.u32 %v160, 7
    %v162 = vsub.s32 0, %v161
    %v163 = vrot.slane %v158, %v162
    %v166 = vunpack.c.l.b16 %v152
    %v167 = vunpack.c.l.b16 %v153
    %v168 = vpack.c.b16 %v167, %v166
    %vm170 = vcmask 130048
    %v172 = vsel %vm170, %v159, 0
    %174 = vmatprep.subr.bf16.mxu0 0
    %175 = vmatpush1.bf16.msra.mxu0 0
    %176 = vmatprep.subr.bf16.mxu0 0
    %177 = vmatpush1.bf16.msra.mxu0 0
    %178 = vmatprep.subr.bf16.mxu0 0
    %179 = vmatpush1.bf16.msra.mxu0 0
    %180 = vmatprep.subr.bf16.mxu0 0
    %181 = vmatpush1.bf16.msra.mxu0 0
    %182 = vmatprep.subr.bf16.mxu0 0
    %183 = vmatpush1.bf16.msra.mxu0 0
    %184 = vmatprep.subr.bf16.mxu0 0
    %185 = vmatpush1.bf16.msra.mxu0 0
    %186 = vmatprep.subr.bf16.mxu0 0
    %187 = vmatpush1.bf16.msra.mxu0 0
    %188 = vmatprep.subr.bf16.mxu0 0
    %189 = vmatpush1.bf16.msra.mxu0 %v168
    %190 = vmatprep.subr.bf16.mxu0 0
    %191 = vmatpush2.bf16.msra.mxu0 0
    %192 = vmatprep.subr.bf16.mxu0 0
    %193 = vmatpush2.bf16.msra.mxu0 0
    %194 = vmatprep.subr.bf16.mxu0 0
    %195 = vmatpush2.bf16.msra.mxu0 0
    %196 = vmatprep.subr.bf16.mxu0 0
    %197 = vmatpush2.bf16.msra.mxu0 0
    %198 = vmatprep.subr.bf16.mxu0 0
    %199 = vmatpush2.bf16.msra.mxu0 0
    %200 = vmatprep.subr.bf16.mxu0 0
    %201 = vmatpush2.bf16.msra.mxu0 0
    %202 = vmatprep.subr.bf16.mxu0 0
    %203 = vmatpush2.bf16.msra.mxu0 0
    %204 = vmatprep.subr.bf16.mxu0 0
    %205 = vmatpush2.bf16.msra.mxu0 0
    %206 = vmatprep.mubr.bf16.mxu0 0
    %207 = vmatmul.mubr.bf16.gmra.mxu0 %v172
    %v208 = vpop.f32.mrf.mxu0
    %v209 = vadd.f32 %v163, %v208
    %v210 = vpop.f32.mrf.mxu0
    %v211 = vpop.f32.mrf.mxu0
    %v212 = vpop.f32.mrf.mxu0
    %213 = vdwg.mxu0
    %v214 = vlaneseq
    %v215 = vand.u32 %v214, 127
    %vm216 = vcmp.ge.s32.totalorder %v215, 64
    %vm217 = vcmp.lt.s32.totalorder %v215, 96
    %vm218 = vmand %vm216, %vm217
    %v219 = vsel %vm218, 1.0, 0.5
    %v224 = vunpack.c.l.b16 %v154
    %v225 = vunpack.c.l.b16 %v155
    %v226 = vunpack.c.l.b16 %v156
    %v227 = vunpack.c.l.b16 %v157
    %v228 = vpack.c.b16 %v225, %v224
    %v229 = vpack.c.b16 %v227, %v226
    %vm232 = vcmask 261120
    %v234 = vsel %vm232, 0, 0
    %236 = vmatprep.subr.bf16.mxu0 0
    %237 = vmatpush1.bf16.msra.mxu0 0
    %238 = vmatprep.subr.bf16.mxu0 0
    %239 = vmatpush1.bf16.msra.mxu0 0
    %240 = vmatprep.subr.bf16.mxu0 0
    %241 = vmatpush1.bf16.msra.mxu0 0
    %242 = vmatprep.subr.bf16.mxu0 0
    %243 = vmatpush1.bf16.msra.mxu0 0
    %244 = vmatprep.subr.bf16.mxu0 0
    %245 = vmatpush1.bf16.msra.mxu0 0
    %246 = vmatprep.subr.bf16.mxu0 0
    %247 = vmatpush1.bf16.msra.mxu0 0
    %248 = vmatprep.subr.bf16.mxu0 0
    %249 = vmatpush1.bf16.msra.mxu0 %v229
    %250 = vmatprep.subr.bf16.mxu0 0
    %251 = vmatpush1.bf16.msra.mxu0 %v228
    %252 = vmatprep.subr.bf16.mxu0 0
    %253 = vmatpush2.bf16.msra.mxu0 0
    %254 = vmatprep.subr.bf16.mxu0 0
    %255 = vmatpush2.bf16.msra.mxu0 0
    %256 = vmatprep.subr.bf16.mxu0 0
    %257 = vmatpush2.bf16.msra.mxu0 0
    %258 = vmatprep.subr.bf16.mxu0 0
    %259 = vmatpush2.bf16.msra.mxu0 0
    %260 = vmatprep.subr.bf16.mxu0 0
    %261 = vmatpush2.bf16.msra.mxu0 0
    %262 = vmatprep.subr.bf16.mxu0 0
    %263 = vmatpush2.bf16.msra.mxu0 0
    %264 = vmatprep.subr.bf16.mxu0 0
    %265 = vmatpush2.bf16.msra.mxu0 0
    %266 = vmatprep.subr.bf16.mxu0 0
    %267 = vmatpush2.bf16.msra.mxu0 0
    %268 = vmatprep.mubr.bf16.mxu0 0
    %269 = vmatmul.mubr.bf16.gmra.mxu0 %v234
    %v270 = vpop.f32.mrf.mxu0
    %v271 = vadd.f32 0.0, %v270
    %v272 = vpop.f32.mrf.mxu0
    %v273 = vpop.f32.mrf.mxu0
    %v274 = vpop.f32.mrf.mxu0
    %275 = vdwg.mxu0
    %v276 = vadd.f32 %v209, %v271
    %v277 = vmul.f32 %v276, %v219
    %v278 = vtanh.pop %v277
    %v279 = vmul.f32 %v278, 0.5
    %v280 = vadd.f32 %v279, 0.5
    %v281 = vmul.f32 %v280, 0.0
    %283 = vrot.lane.b32.xlu0 %v278, 64
    %v284 = vpop.permute.xlu0 %283
    %v286 = vmul.f32 %v280, %v284
    %288 = vrot.lane.b32.xlu0 %v286, 32
    %v289 = vpop.permute.xlu0 %288
    %v291 = vadd.f32 %v281, %v289
    %v292 = vtanh.pop %v291
    %294 = vrot.lane.b32.xlu0 %v292, 64
    %v295 = vpop.permute.xlu0 %294
    %v297 = vmul.f32 %v280, %v295
    %v298 = vpack.c.bf16 %v297, %v297
    %300 = vrot.lane.b32.xlu0 %v298, 32
    %v301 = vpop.permute.xlu0 %300
    %v303 = vsel %vm232, %v301, 0
    %305 = vmatprep.subr.bf16.mxu0 0
    %306 = vmatpush1.bf16.msra.mxu0 0
    %307 = vmatprep.subr.bf16.mxu0 0
    %308 = vmatpush1.bf16.msra.mxu0 0
    %309 = vmatprep.subr.bf16.mxu0 0
    %310 = vmatpush1.bf16.msra.mxu0 0
    %311 = vmatprep.subr.bf16.mxu0 0
    %312 = vmatpush1.bf16.msra.mxu0 0
    %313 = vmatprep.subr.bf16.mxu0 0
    %314 = vmatpush1.bf16.msra.mxu0 0
    %315 = vmatprep.subr.bf16.mxu0 0
    %316 = vmatpush1.bf16.msra.mxu0 0
    %317 = vmatprep.subr.bf16.mxu0 0
    %318 = vmatpush1.bf16.msra.mxu0 %v229
    %319 = vmatprep.subr.bf16.mxu0 0
    %320 = vmatpush1.bf16.msra.mxu0 %v228
    %321 = vmatprep.subr.bf16.mxu0 0
    %322 = vmatpush2.bf16.msra.mxu0 0
    %323 = vmatprep.subr.bf16.mxu0 0
    %324 = vmatpush2.bf16.msra.mxu0 0
    %325 = vmatprep.subr.bf16.mxu0 0
    %326 = vmatpush2.bf16.msra.mxu0 0
    %327 = vmatprep.subr.bf16.mxu0 0
    %328 = vmatpush2.bf16.msra.mxu0 0
    %329 = vmatprep.subr.bf16.mxu0 0
    %330 = vmatpush2.bf16.msra.mxu0 0
    %331 = vmatprep.subr.bf16.mxu0 0
    %332 = vmatpush2.bf16.msra.mxu0 0
    %333 = vmatprep.subr.bf16.mxu0 0
    %334 = vmatpush2.bf16.msra.mxu0 0
    %335 = vmatprep.subr.bf16.mxu0 0
    %336 = vmatpush2.bf16.msra.mxu0 0
    %337 = vmatprep.mubr.bf16.mxu0 0
    %338 = vmatmul.mubr.bf16.gmra.mxu0 %v303
    %v339 = vpop.f32.mrf.mxu0
    %v340 = vadd.f32 0.0, %v339
    %v341 = vpop.f32.mrf.mxu0
    %v342 = vpop.f32.mrf.mxu0
    %v343 = vpop.f32.mrf.mxu0
    %344 = vdwg.mxu0
    %v346 = vrot.slane %v340, 7
    %v348 = vadd.f32 %v209, %v346
    %v349 = vmul.f32 %v348, %v219
    %v350 = vtanh.pop %v349
    %v351 = vmul.f32 %v350, 0.5
    %v352 = vadd.f32 %v351, 0.5
    %v354 = vrot.slane %v291, 7
    %v356 = vmul.f32 %v352, %v354
    %358 = vrot.lane.b32.xlu0 %v350, 64
    %v359 = vpop.permute.xlu0 %358
    %v361 = vmul.f32 %v352, %v359
    %363 = vrot.lane.b32.xlu0 %v361, 32
    %v364 = vpop.permute.xlu0 %363
    %v366 = vadd.f32 %v356, %v364
    %v367 = vtanh.pop %v366
    %369 = vrot.lane.b32.xlu0 %v367, 64
    %v370 = vpop.permute.xlu0 %369
    %v372 = vmul.f32 %v352, %v370
    %v373 = vpack.c.bf16 %v372, %v372
    %v375 = vshrl.u32 %v373, 16
    %377 = vrot.lane.b32.xlu0 %v375, 32
    %v378 = vpop.permute.xlu0 %377
    %v380 = vsel %vm232, %v378, 0
    %382 = vmatprep.subr.bf16.mxu0 0
    %383 = vmatpush1.bf16.msra.mxu0 0
    %384 = vmatprep.subr.bf16.mxu0 0
    %385 = vmatpush1.bf16.msra.mxu0 0
    %386 = vmatprep.subr.bf16.mxu0 0
    %387 = vmatpush1.bf16.msra.mxu0 0
    %388 = vmatprep.subr.bf16.mxu0 0
    %389 = vmatpush1.bf16.msra.mxu0 0
    %390 = vmatprep.subr.bf16.mxu0 0
    %391 = vmatpush1.bf16.msra.mxu0 0
    %392 = vmatprep.subr.bf16.mxu0 0
    %393 = vmatpush1.bf16.msra.mxu0 0
    %394 = vmatprep.subr.bf16.mxu0 0
    %395 = vmatpush1.bf16.msra.mxu0 %v229
    %396 = vmatprep.subr.bf16.mxu0 0
    %397 = vmatpush1.bf16.msra.mxu0 %v228
    %398 = vmatprep.subr.bf16.mxu0 0
    %399 = vmatpush2.bf16.msra.mxu0 0
    %400 = vmatprep.subr.bf16.mxu0 0
    %401 = vmatpush2.bf16.msra.mxu0 0
    %402 = vmatprep.subr.bf16.mxu0 0
    %403 = vmatpush2.bf16.msra.mxu0 0
    %404 = vmatprep.subr.bf16.mxu0 0
    %405 = vmatpush2.bf16.msra.mxu0 0
    %406 = vmatprep.subr.bf16.mxu0 0
    %407 = vmatpush2.bf16.msra.mxu0 0
    %408 = vmatprep.subr.bf16.mxu0 0
    %409 = vmatpush2.bf16.msra.mxu0 0
    %410 = vmatprep.subr.bf16.mxu0 0
    %411 = vmatpush2.bf16.msra.mxu0 0
    %412 = vmatprep.subr.bf16.mxu0 0
    %413 = vmatpush2.bf16.msra.mxu0 0
    %414 = vmatprep.mubr.bf16.mxu0 0
    %415 = vmatmul.mubr.bf16.gmra.mxu0 %v380
    %v416 = vpop.f32.mrf.mxu0
    %v417 = vadd.f32 0.0, %v416
    %v418 = vpop.f32.mrf.mxu0
    %v419 = vpop.f32.mrf.mxu0
    %v420 = vpop.f32.mrf.mxu0
    %421 = vdwg.mxu0
    %v423 = vrot.slane %v417, 6
    %v425 = vadd.f32 %v209, %v423
    %v426 = vmul.f32 %v425, %v219
    %v427 = vtanh.pop %v426
    %v428 = vmul.f32 %v427, 0.5
    %v429 = vadd.f32 %v428, 0.5
    %v431 = vrot.slane %v366, 7
    %v433 = vmul.f32 %v429, %v431
    %435 = vrot.lane.b32.xlu0 %v427, 64
    %v436 = vpop.permute.xlu0 %435
    %v438 = vmul.f32 %v429, %v436
    %440 = vrot.lane.b32.xlu0 %v438, 32
    %v441 = vpop.permute.xlu0 %440
    %v443 = vadd.f32 %v433, %v441
    %v444 = vtanh.pop %v443
    %446 = vrot.lane.b32.xlu0 %v444, 64
    %v447 = vpop.permute.xlu0 %446
    %v449 = vmul.f32 %v429, %v447
    %v450 = vpack.c.bf16 %v449, %v449
    %v452 = vrot.slane %v450, 1
    %453 = vrot.lane.b32.xlu0 %v452, 32
    %v454 = vpop.permute.xlu0 %453
    %v456 = vsel %vm232, %v454, 0
    %458 = vmatprep.subr.bf16.mxu0 0
    %459 = vmatpush1.bf16.msra.mxu0 0
    %460 = vmatprep.subr.bf16.mxu0 0
    %461 = vmatpush1.bf16.msra.mxu0 0
    %462 = vmatprep.subr.bf16.mxu0 0
    %463 = vmatpush1.bf16.msra.mxu0 0
    %464 = vmatprep.subr.bf16.mxu0 0
    %465 = vmatpush1.bf16.msra.mxu0 0
    %466 = vmatprep.subr.bf16.mxu0 0
    %467 = vmatpush1.bf16.msra.mxu0 0
    %468 = vmatprep.subr.bf16.mxu0 0
    %469 = vmatpush1.bf16.msra.mxu0 0
    %470 = vmatprep.subr.bf16.mxu0 0
    %471 = vmatpush1.bf16.msra.mxu0 %v229
    %472 = vmatprep.subr.bf16.mxu0 0
    %473 = vmatpush1.bf16.msra.mxu0 %v228
    %474 = vmatprep.subr.bf16.mxu0 0
    %475 = vmatpush2.bf16.msra.mxu0 0
    %476 = vmatprep.subr.bf16.mxu0 0
    %477 = vmatpush2.bf16.msra.mxu0 0
    %478 = vmatprep.subr.bf16.mxu0 0
    %479 = vmatpush2.bf16.msra.mxu0 0
    %480 = vmatprep.subr.bf16.mxu0 0
    %481 = vmatpush2.bf16.msra.mxu0 0
    %482 = vmatprep.subr.bf16.mxu0 0
    %483 = vmatpush2.bf16.msra.mxu0 0
    %484 = vmatprep.subr.bf16.mxu0 0
    %485 = vmatpush2.bf16.msra.mxu0 0
    %486 = vmatprep.subr.bf16.mxu0 0
    %487 = vmatpush2.bf16.msra.mxu0 0
    %488 = vmatprep.subr.bf16.mxu0 0
    %489 = vmatpush2.bf16.msra.mxu0 0
    %490 = vmatprep.mubr.bf16.mxu0 0
    %491 = vmatmul.mubr.bf16.gmra.mxu0 %v456
    %v492 = vpop.f32.mrf.mxu0
    %v493 = vadd.f32 0.0, %v492
    %v494 = vpop.f32.mrf.mxu0
    %v495 = vpop.f32.mrf.mxu0
    %v496 = vpop.f32.mrf.mxu0
    %497 = vdwg.mxu0
    %v499 = vrot.slane %v493, 5
    %v501 = vadd.f32 %v209, %v499
    %v502 = vmul.f32 %v501, %v219
    %v503 = vtanh.pop %v502
    %v504 = vmul.f32 %v503, 0.5
    %v505 = vadd.f32 %v504, 0.5
    %v507 = vrot.slane %v443, 7
    %v509 = vmul.f32 %v505, %v507
    %511 = vrot.lane.b32.xlu0 %v503, 64
    %v512 = vpop.permute.xlu0 %511
    %v514 = vmul.f32 %v505, %v512
    %516 = vrot.lane.b32.xlu0 %v514, 32
    %v517 = vpop.permute.xlu0 %516
    %v519 = vadd.f32 %v509, %v517
    %v520 = vtanh.pop %v519
    %522 = vrot.lane.b32.xlu0 %v520, 64
    %v523 = vpop.permute.xlu0 %522
    %v525 = vmul.f32 %v505, %v523
    %v526 = vpack.c.bf16 %v525, %v525
    %v528 = vshrl.u32 %v526, 16
    %v530 = vrot.slane %v528, 1
    %531 = vrot.lane.b32.xlu0 %v530, 32
    %v532 = vpop.permute.xlu0 %531
    %v534 = vsel %vm232, %v532, 0
    %536 = vmatprep.subr.bf16.mxu0 0
    %537 = vmatpush1.bf16.msra.mxu0 0
    %538 = vmatprep.subr.bf16.mxu0 0
    %539 = vmatpush1.bf16.msra.mxu0 0
    %540 = vmatprep.subr.bf16.mxu0 0
    %541 = vmatpush1.bf16.msra.mxu0 0
    %542 = vmatprep.subr.bf16.mxu0 0
    %543 = vmatpush1.bf16.msra.mxu0 0
    %544 = vmatprep.subr.bf16.mxu0 0
    %545 = vmatpush1.bf16.msra.mxu0 0
    %546 = vmatprep.subr.bf16.mxu0 0
    %547 = vmatpush1.bf16.msra.mxu0 0
    %548 = vmatprep.subr.bf16.mxu0 0
    %549 = vmatpush1.bf16.msra.mxu0 %v229
    %550 = vmatprep.subr.bf16.mxu0 0
    %551 = vmatpush1.bf16.msra.mxu0 %v228
    %552 = vmatprep.subr.bf16.mxu0 0
    %553 = vmatpush2.bf16.msra.mxu0 0
    %554 = vmatprep.subr.bf16.mxu0 0
    %555 = vmatpush2.bf16.msra.mxu0 0
    %556 = vmatprep.subr.bf16.mxu0 0
    %557 = vmatpush2.bf16.msra.mxu0 0
    %558 = vmatprep.subr.bf16.mxu0 0
    %559 = vmatpush2.bf16.msra.mxu0 0
    %560 = vmatprep.subr.bf16.mxu0 0
    %561 = vmatpush2.bf16.msra.mxu0 0
    %562 = vmatprep.subr.bf16.mxu0 0
    %563 = vmatpush2.bf16.msra.mxu0 0
    %564 = vmatprep.subr.bf16.mxu0 0
    %565 = vmatpush2.bf16.msra.mxu0 0
    %566 = vmatprep.subr.bf16.mxu0 0
    %567 = vmatpush2.bf16.msra.mxu0 0
    %568 = vmatprep.mubr.bf16.mxu0 0
    %569 = vmatmul.mubr.bf16.gmra.mxu0 %v534
    %v570 = vpop.f32.mrf.mxu0
    %v571 = vadd.f32 0.0, %v570
    %v572 = vpop.f32.mrf.mxu0
    %v573 = vpop.f32.mrf.mxu0
    %v574 = vpop.f32.mrf.mxu0
    %575 = vdwg.mxu0
    %v577 = vrot.slane %v571, 4
    %v579 = vadd.f32 %v209, %v577
    %v580 = vmul.f32 %v579, %v219
    %v581 = vtanh.pop %v580
    %v582 = vmul.f32 %v581, 0.5
    %v583 = vadd.f32 %v582, 0.5
    %v585 = vrot.slane %v519, 7
    %v587 = vmul.f32 %v583, %v585
    %589 = vrot.lane.b32.xlu0 %v581, 64
    %v590 = vpop.permute.xlu0 %589
    %v592 = vmul.f32 %v583, %v590
    %594 = vrot.lane.b32.xlu0 %v592, 32
    %v595 = vpop.permute.xlu0 %594
    %v597 = vadd.f32 %v587, %v595
    %v598 = vtanh.pop %v597
    %600 = vrot.lane.b32.xlu0 %v598, 64
    %v601 = vpop.permute.xlu0 %600
    %v603 = vmul.f32 %v583, %v601
    %v604 = vpack.c.bf16 %v603, %v603
    %v606 = vrot.slane %v604, 2
    %607 = vrot.lane.b32.xlu0 %v606, 32
    %v608 = vpop.permute.xlu0 %607
    %v610 = vsel %vm232, %v608, 0
    %612 = vmatprep.subr.bf16.mxu0 0
    %613 = vmatpush1.bf16.msra.mxu0 0
    %614 = vmatprep.subr.bf16.mxu0 0
    %615 = vmatpush1.bf16.msra.mxu0 0
    %616 = vmatprep.subr.bf16.mxu0 0
    %617 = vmatpush1.bf16.msra.mxu0 0
    %618 = vmatprep.subr.bf16.mxu0 0
    %619 = vmatpush1.bf16.msra.mxu0 0
    %620 = vmatprep.subr.bf16.mxu0 0
    %621 = vmatpush1.bf16.msra.mxu0 0
    %622 = vmatprep.subr.bf16.mxu0 0
    %623 = vmatpush1.bf16.msra.mxu0 0
    %624 = vmatprep.subr.bf16.mxu0 0
    %625 = vmatpush1.bf16.msra.mxu0 %v229
    %626 = vmatprep.subr.bf16.mxu0 0
    %627 = vmatpush1.bf16.msra.mxu0 %v228
    %628 = vmatprep.subr.bf16.mxu0 0
    %629 = vmatpush2.bf16.msra.mxu0 0
    %630 = vmatprep.subr.bf16.mxu0 0
    %631 = vmatpush2.bf16.msra.mxu0 0
    %632 = vmatprep.subr.bf16.mxu0 0
    %633 = vmatpush2.bf16.msra.mxu0 0
    %634 = vmatprep.subr.bf16.mxu0 0
    %635 = vmatpush2.bf16.msra.mxu0 0
    %636 = vmatprep.subr.bf16.mxu0 0
    %637 = vmatpush2.bf16.msra.mxu0 0
    %638 = vmatprep.subr.bf16.mxu0 0
    %639 = vmatpush2.bf16.msra.mxu0 0
    %640 = vmatprep.subr.bf16.mxu0 0
    %641 = vmatpush2.bf16.msra.mxu0 0
    %642 = vmatprep.subr.bf16.mxu0 0
    %643 = vmatpush2.bf16.msra.mxu0 0
    %644 = vmatprep.mubr.bf16.mxu0 0
    %645 = vmatmul.mubr.bf16.gmra.mxu0 %v610
    %v646 = vpop.f32.mrf.mxu0
    %v647 = vadd.f32 0.0, %v646
    %v648 = vpop.f32.mrf.mxu0
    %v649 = vpop.f32.mrf.mxu0
    %v650 = vpop.f32.mrf.mxu0
    %651 = vdwg.mxu0
    %v653 = vrot.slane %v647, 3
    %v655 = vadd.f32 %v209, %v653
    %v656 = vmul.f32 %v655, %v219
    %v657 = vtanh.pop %v656
    %v658 = vmul.f32 %v657, 0.5
    %v659 = vadd.f32 %v658, 0.5
    %v661 = vrot.slane %v597, 7
    %v663 = vmul.f32 %v659, %v661
    %665 = vrot.lane.b32.xlu0 %v657, 64
    %v666 = vpop.permute.xlu0 %665
    %v668 = vmul.f32 %v659, %v666
    %670 = vrot.lane.b32.xlu0 %v668, 32
    %v671 = vpop.permute.xlu0 %670
    %v673 = vadd.f32 %v663, %v671
    %v674 = vtanh.pop %v673
    %676 = vrot.lane.b32.xlu0 %v674, 64
    %v677 = vpop.permute.xlu0 %676
    %v679 = vmul.f32 %v659, %v677
    %v680 = vpack.c.bf16 %v679, %v679
    %v682 = vshrl.u32 %v680, 16
    %v684 = vrot.slane %v682, 2
    %685 = vrot.lane.b32.xlu0 %v684, 32
    %v686 = vpop.permute.xlu0 %685
    %v688 = vsel %vm232, %v686, 0
    %690 = vmatprep.subr.bf16.mxu0 0
    %691 = vmatpush1.bf16.msra.mxu0 0
    %692 = vmatprep.subr.bf16.mxu0 0
    %693 = vmatpush1.bf16.msra.mxu0 0
    %694 = vmatprep.subr.bf16.mxu0 0
    %695 = vmatpush1.bf16.msra.mxu0 0
    %696 = vmatprep.subr.bf16.mxu0 0
    %697 = vmatpush1.bf16.msra.mxu0 0
    %698 = vmatprep.subr.bf16.mxu0 0
    %699 = vmatpush1.bf16.msra.mxu0 0
    %700 = vmatprep.subr.bf16.mxu0 0
    %701 = vmatpush1.bf16.msra.mxu0 0
    %702 = vmatprep.subr.bf16.mxu0 0
    %703 = vmatpush1.bf16.msra.mxu0 %v229
    %704 = vmatprep.subr.bf16.mxu0 0
    %705 = vmatpush1.bf16.msra.mxu0 %v228
    %706 = vmatprep.subr.bf16.mxu0 0
    %707 = vmatpush2.bf16.msra.mxu0 0
    %708 = vmatprep.subr.bf16.mxu0 0
    %709 = vmatpush2.bf16.msra.mxu0 0
    %710 = vmatprep.subr.bf16.mxu0 0
    %711 = vmatpush2.bf16.msra.mxu0 0
    %712 = vmatprep.subr.bf16.mxu0 0
    %713 = vmatpush2.bf16.msra.mxu0 0
    %714 = vmatprep.subr.bf16.mxu0 0
    %715 = vmatpush2.bf16.msra.mxu0 0
    %716 = vmatprep.subr.bf16.mxu0 0
    %717 = vmatpush2.bf16.msra.mxu0 0
    %718 = vmatprep.subr.bf16.mxu0 0
    %719 = vmatpush2.bf16.msra.mxu0 0
    %720 = vmatprep.subr.bf16.mxu0 0
    %721 = vmatpush2.bf16.msra.mxu0 0
    %722 = vmatprep.mubr.bf16.mxu0 0
    %723 = vmatmul.mubr.bf16.gmra.mxu0 %v688
    %v724 = vpop.f32.mrf.mxu0
    %v725 = vadd.f32 0.0, %v724
    %v726 = vpop.f32.mrf.mxu0
    %v727 = vpop.f32.mrf.mxu0
    %v728 = vpop.f32.mrf.mxu0
    %729 = vdwg.mxu0
    %v731 = vrot.slane %v725, 2
    %v733 = vadd.f32 %v209, %v731
    %v734 = vmul.f32 %v733, %v219
    %v735 = vtanh.pop %v734
    %v736 = vmul.f32 %v735, 0.5
    %v737 = vadd.f32 %v736, 0.5
    %v739 = vrot.slane %v673, 7
    %v741 = vmul.f32 %v737, %v739
    %743 = vrot.lane.b32.xlu0 %v735, 64
    %v744 = vpop.permute.xlu0 %743
    %v746 = vmul.f32 %v737, %v744
    %748 = vrot.lane.b32.xlu0 %v746, 32
    %v749 = vpop.permute.xlu0 %748
    %v751 = vadd.f32 %v741, %v749
    %v752 = vtanh.pop %v751
    %754 = vrot.lane.b32.xlu0 %v752, 64
    %v755 = vpop.permute.xlu0 %754
    %v757 = vmul.f32 %v737, %v755
    %v758 = vpack.c.bf16 %v757, %v757
    %v760 = vrot.slane %v758, 3
    %761 = vrot.lane.b32.xlu0 %v760, 32
    %v762 = vpop.permute.xlu0 %761
    %v764 = vsel %vm232, %v762, 0
    %766 = vmatprep.subr.bf16.mxu0 0
    %767 = vmatpush1.bf16.msra.mxu0 0
    %768 = vmatprep.subr.bf16.mxu0 0
    %769 = vmatpush1.bf16.msra.mxu0 0
    %770 = vmatprep.subr.bf16.mxu0 0
    %771 = vmatpush1.bf16.msra.mxu0 0
    %772 = vmatprep.subr.bf16.mxu0 0
    %773 = vmatpush1.bf16.msra.mxu0 0
    %774 = vmatprep.subr.bf16.mxu0 0
    %775 = vmatpush1.bf16.msra.mxu0 0
    %776 = vmatprep.subr.bf16.mxu0 0
    %777 = vmatpush1.bf16.msra.mxu0 0
    %778 = vmatprep.subr.bf16.mxu0 0
    %779 = vmatpush1.bf16.msra.mxu0 %v229
    %780 = vmatprep.subr.bf16.mxu0 0
    %781 = vmatpush1.bf16.msra.mxu0 %v228
    %782 = vmatprep.subr.bf16.mxu0 0
    %783 = vmatpush2.bf16.msra.mxu0 0
    %784 = vmatprep.subr.bf16.mxu0 0
    %785 = vmatpush2.bf16.msra.mxu0 0
    %786 = vmatprep.subr.bf16.mxu0 0
    %787 = vmatpush2.bf16.msra.mxu0 0
    %788 = vmatprep.subr.bf16.mxu0 0
    %789 = vmatpush2.bf16.msra.mxu0 0
    %790 = vmatprep.subr.bf16.mxu0 0
    %791 = vmatpush2.bf16.msra.mxu0 0
    %792 = vmatprep.subr.bf16.mxu0 0
    %793 = vmatpush2.bf16.msra.mxu0 0
    %794 = vmatprep.subr.bf16.mxu0 0
    %795 = vmatpush2.bf16.msra.mxu0 0
    %796 = vmatprep.subr.bf16.mxu0 0
    %797 = vmatpush2.bf16.msra.mxu0 0
    %798 = vmatprep.mubr.bf16.mxu0 0
    %799 = vmatmul.mubr.bf16.gmra.mxu0 %v764
    %v800 = vpop.f32.mrf.mxu0
    %v801 = vadd.f32 0.0, %v800
    %v802 = vpop.f32.mrf.mxu0
    %v803 = vpop.f32.mrf.mxu0
    %v804 = vpop.f32.mrf.mxu0
    %805 = vdwg.mxu0
    %v807 = vrot.slane %v801, 1
    %v809 = vadd.f32 %v209, %v807
    %v810 = vmul.f32 %v809, %v219
    %v811 = vtanh.pop %v810
    %v812 = vmul.f32 %v811, 0.5
    %v813 = vadd.f32 %v812, 0.5
    %v815 = vrot.slane %v751, 7
    %v817 = vmul.f32 %v813, %v815
    %819 = vrot.lane.b32.xlu0 %v811, 64
    %v820 = vpop.permute.xlu0 %819
    %v822 = vmul.f32 %v813, %v820
    %824 = vrot.lane.b32.xlu0 %v822, 32
    %v825 = vpop.permute.xlu0 %824
    %v827 = vadd.f32 %v817, %v825
    %v828 = vtanh.pop %v827
    %830 = vrot.lane.b32.xlu0 %v828, 64
    %v831 = vpop.permute.xlu0 %830
    %v833 = vmul.f32 %v813, %v831
    %v834 = vld [vmem:[%s3 + $0x1] sm:$0x1]
    %v835 = vld [vmem:[%s3 + $0x2] sm:$0x1]
    %v837 = vrot.slane %v834, 1
    %838 = vrot.lane.b32.xlu0 %v837, 96
    %v839 = vpop.permute.xlu0 %838
    %v841 = vmul.f32 %v833, %v839
    %843 = vrot.lane.b32.xlu0 %v841, 32
    %v844 = vpop.permute.xlu0 %843
    %vm846 = vcmask 261127
    %v847 = vsel %vm846, %v844, 0.0
    %848 = vadd.xlane.f32.xlu0 %v847
    %v849 = vpop.xlane.xlu0 %848
    %v851 = vrot.slane %v835, 1
    %v853 = vadd.f32 %v849, %v851
    %v854 = vmax.f32 %v853, 0.0
    %v855 = vand.u32 2147483647, %v853
    %v856 = vsub.f32 0.0, %v855
    %v857 = vmul.f32 %v856, 1.442695
    %v858 = vpow.pop %v857
    %v859 = vadd.f32 %v858, 1.0
    %v860 = vlog2.pop %v859
    %v861 = vmul.f32 %v860, 0.6931472
    %v862 = vadd.f32 %v854, %v861
    %v863 = vsub.f32 0.0, %v862
    %v864 = vsub.f32 0.0, %v853
    %v865 = vmax.f32 %v864, 0.0
    %v866 = vand.u32 2147483647, %v864
    %v867 = vsub.f32 0.0, %v866
    %v868 = vmul.f32 %v867, 1.442695
    %v869 = vpow.pop %v868
    %v870 = vadd.f32 %v869, 1.0
    %v871 = vlog2.pop %v870
    %v872 = vmul.f32 %v871, 0.6931472
    %v873 = vadd.f32 %v865, %v872
    %v874 = vsub.f32 0.0, %v873
    %876 = vrot.lane.b32.xlu0 %v874, 1
    %v877 = vpop.permute.xlu0 %876
    %vm879 = vcmask 7168
    %v880 = vsel %vm879, %v863, %v877
    %vm881 = vcmask 15367
    %882 = vst.msk [vmem:[#allocation5 - $0x7] sm:$0x80] %vm881, %v880
    // Predicated region
    $region22: #{linguo_forward.1} parent=1 // pred_check
      _
    $region23: #{linguo_forward.1} parent=1 // pred_check_branch
      %884 = sbr.rel (0) target = $region25
    $region24: #{linguo_forward.1} parent=1 // pred_region
      %s886 = ssub.s32 16, 16
      %887 = vsyncadd [#allocation3], %s886
      %s889 = sshll.u32 [#allocation5], 4
      %s890 = int_to_ptr.vmem [resolvable:$true] %s889
      %892 = dma.vmem_to_hbm [thread:$0]  %s890, 16, %s4, [#allocation3]
    $region25: #{linguo_forward.1} parent=1 // pred_fallthru
      _
    // Predicated region
    $region26: #{linguo_forward.1} parent=1 // pred_check
      _
    $region27: #{linguo_forward.1} parent=1 // pred_check_branch
      %894 = sbr.rel (0) target = $region29
    $region28: #{linguo_forward.1} parent=1 // pred_region
      %895 = dma.done [#allocation3], 16
    $region29: #{linguo_forward.1} parent=1 // pred_fallthru
      _
    %896 = vsyncpa [#allocation3], 1
    %897 = vsyncpa [#allocation4], 1

</llo_original>
